<compile_context>
chip_gen: v7x
topology: tpu7x:2x2x1
jax: 0.10.0
libtpu: 0.0.40
codegen_flags: <defaults>
</compile_context>

<pallas_src>
import functools

import jax
import jax.numpy as jnp
from jax.experimental import pallas as pl
from jax.experimental.pallas import tpu as pltpu  # noqa: F401  (TPU backend)

LANES = 128
_EPS = 1e-5


def _round_up(n, m):
    return ((n + m - 1) // m) * m


# ----------------------------------------------------------------------------
# Packed-parameter layout: one (rows, 128) f32 buffer.  Weight matrices start
# on 8-row (sublane) aligned offsets; every 1-D parameter gets its own row.
# ----------------------------------------------------------------------------
def _param_layout(d_in, h1, h2, d_out):
    del d_out  # fc3 weight / bias are padded out to the full 128 lanes
    off = {}
    r = 0
    off["w1"] = r; r = _round_up(r + d_in, 8)
    off["w2"] = r; r = _round_up(r + h1, 8)
    off["w3"] = r; r = _round_up(r + h2, 8)
    for name in ("g1", "b1", "g2", "b2", "g3", "b3", "c1", "c2", "c3"):
        off[name] = r
        r += 1
    return off, _round_up(r, 8)


def pack_mlp_params(params, *, d_in=20, hidden=(32, 32), d_out=2):
    (g1, b1, g2, b2, g3, b3, w1, c1, w2, c2, w3, c3) = params
    h1, h2 = hidden
    off, rows = _param_layout(d_in, h1, h2, d_out)
    buf = jnp.zeros((rows, LANES), jnp.float32)
    buf = buf.at[off["w1"]:off["w1"] + d_in, :h1].set(w1)
    buf = buf.at[off["w2"]:off["w2"] + h1, :h2].set(w2)
    buf = buf.at[off["w3"]:off["w3"] + h2, :d_out].set(w3)   # zero-padded to 128 lanes
    for name, vec in (("g1", g1), ("b1", b1), ("g2", g2), ("b2", b2),
                      ("g3", g3), ("b3", b3), ("c1", c1), ("c2", c2), ("c3", c3)):
        v = jnp.reshape(vec, (-1,))
        buf = buf.at[off[name], :v.shape[0]].set(v)
    return buf


def pack_naive_params(w, c):
    # rows: 0 -> W[0,:], 1 -> W[1,:], 2 -> bias; all zero-padded to 128 lanes
    buf = jnp.zeros((8, LANES), jnp.float32)
    buf = buf.at[0, :w.shape[1]].set(w[0])
    buf = buf.at[1, :w.shape[1]].set(w[1])
    buf = buf.at[2, :w.shape[1]].set(jnp.reshape(c, (-1,)))
    return buf


# ----------------------------------------------------------------------------
# Kernels
# ----------------------------------------------------------------------------
def _mlp_kernel(activation, d_in, h1, h2, off, x_ref, p_ref, o_ref):
    """Fused BN->fc1->act->BN->fc2->act->BN->fc3 with folded BN and packed params."""
    if activation == "tanh":
        act = jnp.tanh
    else:  # relu
        act = lambda v: jnp.maximum(v, 0.0)

    def vec(name, width):
        r = off[name]
        return p_ref[r:r + 1, 0:width]                              # (1, width)

    def bn_fold(h, gname, bname, width):
        # training-mode BN, one-pass stats; BN(h) == h * s + shift
        mean = jnp.mean(h, axis=0, keepdims=True)
        var = jnp.maximum(jnp.mean(h * h, axis=0, keepdims=True) - mean * mean, 0.0)
        s = vec(gname, width) * jax.lax.rsqrt(var + _EPS)
        shift = vec(bname, width) - mean * s
        return s, shift

    x = x_ref[...].astype(jnp.float32)                              # (B, d_in)

    # ---- BN1 -> fc1 -> act ----
    w1 = p_ref[off["w1"]:off["w1"] + d_in, 0:h1]                    # (d_in, h1)
    s1, t1 = bn_fold(x, "g1", "b1", d_in)
    bias1 = jnp.dot(t1, w1, preferred_element_type=jnp.float32) + vec("c1", h1)
    h = act(jnp.dot(x * s1, w1, preferred_element_type=jnp.float32) + bias1)

    # ---- BN2 -> fc2 -> act ----
    w2 = p_ref[off["w2"]:off["w2"] + h1, 0:h2]                      # (h1, h2)
    s2, t2 = bn_fold(h, "g2", "b2", h1)
    bias2 = jnp.dot(t2, w2, preferred_element_type=jnp.float32) + vec("c2", h2)
    h = act(jnp.dot(h * s2, w2, preferred_element_type=jnp.float32) + bias2)

    # ---- BN3 -> fc3 (output padded to 128 lanes -> unmasked lane-dense store) ----
    w3 = p_ref[off["w3"]:off["w3"] + h2, :]                         # (h2, 128), zero-padded
    s3, t3 = bn_fold(h, "g3", "b3", h2)
    bias3 = jnp.dot(t3, w3, preferred_element_type=jnp.float32) + vec("c3", LANES)
    o_ref[...] = jnp.dot(h * s3, w3, preferred_element_type=jnp.float32) + bias3


def _naive_kernel(d_half, x_ref, p_ref, o_ref):
    """naive=True: stack(argmax(x[:, :10]), argmax(x[:, 10:])) -> Linear(2, 2)."""
    x = x_ref[...].astype(jnp.float32)

    def first_argmax(xs):  # (B, K) -> (B, 1) float, first maximal index (torch rule)
        k = xs.shape[1]
        idx = jax.lax.broadcasted_iota(jnp.int32, xs.shape, 1)
        m = jnp.max(xs, axis=1, keepdims=True)
        cand = jnp.where(xs == m, idx, k)
        return jnp.min(cand, axis=1, keepdims=True).astype(jnp.float32)

    # hard-coded 10/10 feature split, as in the original module (assumes 20 inputs)
    f0 = first_argmax(x[:, :d_half])                                # (B, 1)
    f1 = first_argmax(x[:, d_half:])                                # (B, 1)

    # Linear(2, 2) as two lane-broadcast FMAs on the VPU (no MXU for a 2-wide dot).
    w_row0 = p_ref[0:1, :]                                          # (1, 128)
    w_row1 = p_ref[1:2, :]
    bias = p_ref[2:3, :]
    o_ref[...] = f0 * w_row0 + f1 * w_row1 + bias


# ----------------------------------------------------------------------------
# Wrappers (pallas_call plumbing)
# ----------------------------------------------------------------------------
def _full_spec(shape):
    # whole-array block, no grid
    return pl.BlockSpec(shape, lambda *_: (0,) * len(shape))


def mlp_forward(packed_params, x, *, activation="relu", hidden=(32, 32), d_out=2):
    batch, d_in = x.shape
    h1, h2 = hidden
    off, rows = _param_layout(d_in, h1, h2, d_out)
    assert packed_params.shape == (rows, LANES)
    out_pad = pl.pallas_call(
        functools.partial(_mlp_kernel, activation, d_in, h1, h2, off),
        out_shape=jax.ShapeDtypeStruct((batch, LANES), jnp.float32),
        in_specs=[_full_spec(x.shape), _full_spec(packed_params.shape)],
        out_specs=_full_spec((batch, LANES)),
    )(x, packed_params)
    return out_pad[:, :d_out]          # drop lane padding outside the kernel


def naive_forward(packed_naive, x, *, d_out=2):
    batch, d_in = x.shape
    out_pad = pl.pallas_call(
        functools.partial(_naive_kernel, d_in // 2),
        out_shape=jax.ShapeDtypeStruct((batch, LANES), jnp.float32),
        in_specs=[_full_spec(x.shape), _full_spec(packed_naive.shape)],
        out_specs=_full_spec((batch, LANES)),
    )(x, packed_naive)
    return out_pad[:, :d_out]


# ----------------------------------------------------------------------------
# Deterministic parameter init (torch nn.Linear-style uniform(-1/sqrt(fan_in), .))
# ----------------------------------------------------------------------------
def _linear_init(key, fan_in, fan_out):
    kw, kb = jax.random.split(key)
    bound = 1.0 / float(fan_in) ** 0.5
    w = jax.random.uniform(kw, (fan_in, fan_out), jnp.float32, -bound, bound)  # [in, out]
    b = jax.random.uniform(kb, (fan_out,), jnp.float32, -bound, bound)
    return w, b


def init_mlp_params(key, hidden, d_in=20, d_out=2):
    k1, k2, k3 = jax.random.split(key, 3)
    w1, c1 = _linear_init(k1, d_in, hidden[0])
    w2, c2 = _linear_init(k2, hidden[0], hidden[1])
    w3, c3 = _linear_init(k3, hidden[1], d_out)
    g1, b1 = jnp.ones((d_in,), jnp.float32), jnp.zeros((d_in,), jnp.float32)
    g2, b2 = jnp.ones((hidden[0],), jnp.float32), jnp.zeros((hidden[0],), jnp.float32)
    g3, b3 = jnp.ones((hidden[1],), jnp.float32), jnp.zeros((hidden[1],), jnp.float32)
    return (g1, b1, g2, b2, g3, b3, w1, c1, w2, c2, w3, c3)


# ----------------------------------------------------------------------------
# Pure-JAX references (correctness check)
# ----------------------------------------------------------------------------
def _ref_mlp(params, x, activation):
    (g1, b1, g2, b2, g3, b3, w1, c1, w2, c2, w3, c3) = params
    act = jnp.tanh if activation == "tanh" else jax.nn.relu

    def bn(h, g, b):
        m = jnp.mean(h, axis=0, keepdims=True)
        v = jnp.mean((h - m) ** 2, axis=0, keepdims=True)
        return (h - m) / jnp.sqrt(v + _EPS) * g + b

    h = act(bn(x, g1, b1) @ w1 + c1)
    h = act(bn(h, g2, b2) @ w2 + c2)
    return bn(h, g3, b3) @ w3 + c3


def _ref_naive(w, c, x):
    f0 = jnp.argmax(x[:, :10], axis=1).astype(jnp.float32)
    f1 = jnp.argmax(x[:, 10:], axis=1).astype(jnp.float32)
    return jnp.stack([f0, f1], axis=1) @ w + c


# ----------------------------------------------------------------------------
if __name__ == "__main__":
    param = {"hidden": [32, 32], "activation": "relu", "norm": "batch",
             "naive": False, "drop_proba": [0.1, 0.1, 0.1]}

    key = jax.random.PRNGKey(0)
    kx, kp, kn = jax.random.split(key, 3)

    B, D_IN = 8, 20
    x = jax.random.normal(kx, (B, D_IN), dtype=jnp.float32)

    # main (naive=False) path
    params = init_mlp_params(kp, param["hidden"], d_in=D_IN)
    packed = pack_mlp_params(params, d_in=D_IN, hidden=tuple(param["hidden"]))
    out = jax.block_until_ready(
        mlp_forward(packed, x, activation=param["activation"],
                    hidden=tuple(param["hidden"])))
    ref = _ref_mlp(params, x, param["activation"])
    assert out.shape == (B, 2) and out.dtype == jnp.float32
    assert bool(jnp.allclose(out, ref, rtol=1e-3, atol=1e-3))

    # naive=True path (fcnaive: Linear(2, 2))
    wn, cn = _linear_init(kn, 2, 2)
    packed_naive = pack_naive_params(wn, cn)
    out_naive = jax.block_until_ready(naive_forward(packed_naive, x))
    ref_naive = _ref_naive(wn, cn, x)
    assert out_naive.shape == (B, 2) and out_naive.dtype == jnp.float32
    assert bool(jnp.allclose(out_naive, ref_naive, rtol=1e-3, atol=1e-3))

    print("KERNEL_OK")
</pallas_src>

<mosaic_0001>
module attributes {stable_mosaic.version = 11 : i64} {
  func.func @_mlp_kernel(%arg0: memref<8x20xf32, #tpu.memory_space<vmem>>, %arg1: memref<104x128xf32, #tpu.memory_space<vmem>>, %arg2: memref<8x128xf32, #tpu.memory_space<vmem>>) attributes {dimension_semantics = [], scalar_prefetch = 0 : i64, scratch_operands = 0 : i64, tpu.core_type = #tpu.core_type<tc>} {
    %c0 = arith.constant 0 : index
    %c0_0 = arith.constant 0 : index
    %0 = vector.load %arg0[%c0, %c0_0] : memref<8x20xf32, #tpu.memory_space<vmem>>, vector<8x20xf32>
    %c0_1 = arith.constant 0 : index
    %c0_2 = arith.constant 0 : index
    %1 = vector.load %arg1[%c0_1, %c0_2] : memref<104x128xf32, #tpu.memory_space<vmem>>, vector<20x32xf32>
    %cst = arith.constant dense<0.000000e+00> : vector<20xf32>
    %2 = vector.multi_reduction <add>, %0, %cst [0] : vector<8x20xf32> to vector<20xf32>
    %3 = vector.shape_cast %2 : vector<20xf32> to vector<1x20xf32>
    %cst_3 = arith.constant 8.000000e+00 : f32
    %4 = vector.broadcast %cst_3 : f32 to vector<1x20xf32>
    %5 = arith.divf %3, %4 : vector<1x20xf32>
    %6 = arith.mulf %0, %0 : vector<8x20xf32>
    %cst_4 = arith.constant dense<0.000000e+00> : vector<20xf32>
    %7 = vector.multi_reduction <add>, %6, %cst_4 [0] : vector<8x20xf32> to vector<20xf32>
    %8 = vector.shape_cast %7 : vector<20xf32> to vector<1x20xf32>
    %cst_5 = arith.constant 8.000000e+00 : f32
    %9 = vector.broadcast %cst_5 : f32 to vector<1x20xf32>
    %10 = arith.divf %8, %9 : vector<1x20xf32>
    %11 = arith.mulf %5, %5 : vector<1x20xf32>
    %12 = arith.subf %10, %11 : vector<1x20xf32>
    %cst_6 = arith.constant 0.000000e+00 : f32
    %13 = vector.broadcast %cst_6 : f32 to vector<1x20xf32>
    %14 = arith.maximumf %12, %13 : vector<1x20xf32>
    %c88 = arith.constant 88 : index
    %c0_7 = arith.constant 0 : index
    %15 = vector.load %arg1[%c88, %c0_7] : memref<104x128xf32, #tpu.memory_space<vmem>>, vector<1x20xf32>
    %cst_8 = arith.constant 9.99999974E-6 : f32
    %16 = vector.broadcast %cst_8 : f32 to vector<1x20xf32>
    %17 = arith.addf %14, %16 : vector<1x20xf32>
    %18 = math.rsqrt %17 : vector<1x20xf32>
    %19 = arith.mulf %15, %18 : vector<1x20xf32>
    %c89 = arith.constant 89 : index
    %c0_9 = arith.constant 0 : index
    %20 = vector.load %arg1[%c89, %c0_9] : memref<104x128xf32, #tpu.memory_space<vmem>>, vector<1x20xf32>
    %21 = arith.mulf %5, %19 : vector<1x20xf32>
    %22 = arith.subf %20, %21 : vector<1x20xf32>
    %cst_10 = arith.constant dense<0.000000e+00> : vector<1x32xf32>
    %23 = tpu.matmul %22, %1, %cst_10 {dimension_numbers = #tpu.dot_dimension_numbers<[1], [0], [0], [1], [0, 0, 1, 1], [], []>} : vector<1x20xf32>, vector<20x32xf32>, vector<1x32xf32> -> vector<1x32xf32>
    %c94 = arith.constant 94 : index
    %c0_11 = arith.constant 0 : index
    %24 = vector.load %arg1[%c94, %c0_11] : memref<104x128xf32, #tpu.memory_space<vmem>>, vector<1x32xf32>
    %25 = arith.addf %23, %24 : vector<1x32xf32>
    %26 = vector.broadcast %19 : vector<1x20xf32> to vector<8x20xf32>
    %27 = arith.mulf %0, %26 : vector<8x20xf32>
    %cst_12 = arith.constant dense<0.000000e+00> : vector<8x32xf32>
    %28 = tpu.matmul %27, %1, %cst_12 {dimension_numbers = #tpu.dot_dimension_numbers<[1], [0], [0], [1], [0, 0, 1, 1], [], []>} : vector<8x20xf32>, vector<20x32xf32>, vector<8x32xf32> -> vector<8x32xf32>
    %29 = vector.broadcast %25 : vector<1x32xf32> to vector<8x32xf32>
    %30 = arith.addf %28, %29 : vector<8x32xf32>
    %cst_13 = arith.constant 0.000000e+00 : f32
    %31 = vector.broadcast %cst_13 : f32 to vector<8x32xf32>
    %32 = arith.maximumf %30, %31 : vector<8x32xf32>
    %c24 = arith.constant 24 : index
    %c0_14 = arith.constant 0 : index
    %33 = vector.load %arg1[%c24, %c0_14] : memref<104x128xf32, #tpu.memory_space<vmem>>, vector<32x32xf32>
    %cst_15 = arith.constant dense<0.000000e+00> : vector<32xf32>
    %34 = vector.multi_reduction <add>, %32, %cst_15 [0] : vector<8x32xf32> to vector<32xf32>
    %35 = vector.shape_cast %34 : vector<32xf32> to vector<1x32xf32>
    %cst_16 = arith.constant 8.000000e+00 : f32
    %36 = vector.broadcast %cst_16 : f32 to vector<1x32xf32>
    %37 = arith.divf %35, %36 : vector<1x32xf32>
    %38 = arith.mulf %32, %32 : vector<8x32xf32>
    %cst_17 = arith.constant dense<0.000000e+00> : vector<32xf32>
    %39 = vector.multi_reduction <add>, %38, %cst_17 [0] : vector<8x32xf32> to vector<32xf32>
    %40 = vector.shape_cast %39 : vector<32xf32> to vector<1x32xf32>
    %cst_18 = arith.constant 8.000000e+00 : f32
    %41 = vector.broadcast %cst_18 : f32 to vector<1x32xf32>
    %42 = arith.divf %40, %41 : vector<1x32xf32>
    %43 = arith.mulf %37, %37 : vector<1x32xf32>
    %44 = arith.subf %42, %43 : vector<1x32xf32>
    %cst_19 = arith.constant 0.000000e+00 : f32
    %45 = vector.broadcast %cst_19 : f32 to vector<1x32xf32>
    %46 = arith.maximumf %44, %45 : vector<1x32xf32>
    %c90 = arith.constant 90 : index
    %c0_20 = arith.constant 0 : index
    %47 = vector.load %arg1[%c90, %c0_20] : memref<104x128xf32, #tpu.memory_space<vmem>>, vector<1x32xf32>
    %cst_21 = arith.constant 9.99999974E-6 : f32
    %48 = vector.broadcast %cst_21 : f32 to vector<1x32xf32>
    %49 = arith.addf %46, %48 : vector<1x32xf32>
    %50 = math.rsqrt %49 : vector<1x32xf32>
    %51 = arith.mulf %47, %50 : vector<1x32xf32>
    %c91 = arith.constant 91 : index
    %c0_22 = arith.constant 0 : index
    %52 = vector.load %arg1[%c91, %c0_22] : memref<104x128xf32, #tpu.memory_space<vmem>>, vector<1x32xf32>
    %53 = arith.mulf %37, %51 : vector<1x32xf32>
    %54 = arith.subf %52, %53 : vector<1x32xf32>
    %cst_23 = arith.constant dense<0.000000e+00> : vector<1x32xf32>
    %55 = tpu.matmul %54, %33, %cst_23 {dimension_numbers = #tpu.dot_dimension_numbers<[1], [0], [0], [1], [0, 0, 1, 1], [], []>} : vector<1x32xf32>, vector<32x32xf32>, vector<1x32xf32> -> vector<1x32xf32>
    %c95 = arith.constant 95 : index
    %c0_24 = arith.constant 0 : index
    %56 = vector.load %arg1[%c95, %c0_24] : memref<104x128xf32, #tpu.memory_space<vmem>>, vector<1x32xf32>
    %57 = arith.addf %55, %56 : vector<1x32xf32>
    %58 = vector.broadcast %51 : vector<1x32xf32> to vector<8x32xf32>
    %59 = arith.mulf %32, %58 : vector<8x32xf32>
    %cst_25 = arith.constant dense<0.000000e+00> : vector<8x32xf32>
    %60 = tpu.matmul %59, %33, %cst_25 {dimension_numbers = #tpu.dot_dimension_numbers<[1], [0], [0], [1], [0, 0, 1, 1], [], []>} : vector<8x32xf32>, vector<32x32xf32>, vector<8x32xf32> -> vector<8x32xf32>
    %61 = vector.broadcast %57 : vector<1x32xf32> to vector<8x32xf32>
    %62 = arith.addf %60, %61 : vector<8x32xf32>
    %cst_26 = arith.constant 0.000000e+00 : f32
    %63 = vector.broadcast %cst_26 : f32 to vector<8x32xf32>
    %64 = arith.maximumf %62, %63 : vector<8x32xf32>
    %c56 = arith.constant 56 : index
    %c0_27 = arith.constant 0 : index
    %65 = vector.load %arg1[%c56, %c0_27] : memref<104x128xf32, #tpu.memory_space<vmem>>, vector<32x128xf32>
    %cst_28 = arith.constant dense<0.000000e+00> : vector<32xf32>
    %66 = vector.multi_reduction <add>, %64, %cst_28 [0] : vector<8x32xf32> to vector<32xf32>
    %67 = vector.shape_cast %66 : vector<32xf32> to vector<1x32xf32>
    %cst_29 = arith.constant 8.000000e+00 : f32
    %68 = vector.broadcast %cst_29 : f32 to vector<1x32xf32>
    %69 = arith.divf %67, %68 : vector<1x32xf32>
    %70 = arith.mulf %64, %64 : vector<8x32xf32>
    %cst_30 = arith.constant dense<0.000000e+00> : vector<32xf32>
    %71 = vector.multi_reduction <add>, %70, %cst_30 [0] : vector<8x32xf32> to vector<32xf32>
    %72 = vector.shape_cast %71 : vector<32xf32> to vector<1x32xf32>
    %cst_31 = arith.constant 8.000000e+00 : f32
    %73 = vector.broadcast %cst_31 : f32 to vector<1x32xf32>
    %74 = arith.divf %72, %73 : vector<1x32xf32>
    %75 = arith.mulf %69, %69 : vector<1x32xf32>
    %76 = arith.subf %74, %75 : vector<1x32xf32>
    %cst_32 = arith.constant 0.000000e+00 : f32
    %77 = vector.broadcast %cst_32 : f32 to vector<1x32xf32>
    %78 = arith.maximumf %76, %77 : vector<1x32xf32>
    %c92 = arith.constant 92 : index
    %c0_33 = arith.constant 0 : index
    %79 = vector.load %arg1[%c92, %c0_33] : memref<104x128xf32, #tpu.memory_space<vmem>>, vector<1x32xf32>
    %cst_34 = arith.constant 9.99999974E-6 : f32
    %80 = vector.broadcast %cst_34 : f32 to vector<1x32xf32>
    %81 = arith.addf %78, %80 : vector<1x32xf32>
    %82 = math.rsqrt %81 : vector<1x32xf32>
    %83 = arith.mulf %79, %82 : vector<1x32xf32>
    %c93 = arith.constant 93 : index
    %c0_35 = arith.constant 0 : index
    %84 = vector.load %arg1[%c93, %c0_35] : memref<104x128xf32, #tpu.memory_space<vmem>>, vector<1x32xf32>
    %85 = arith.mulf %69, %83 : vector<1x32xf32>
    %86 = arith.subf %84, %85 : vector<1x32xf32>
    %cst_36 = arith.constant dense<0.000000e+00> : vector<1x128xf32>
    %87 = tpu.matmul %86, %65, %cst_36 {dimension_numbers = #tpu.dot_dimension_numbers<[1], [0], [0], [1], [0, 0, 1, 1], [], []>} : vector<1x32xf32>, vector<32x128xf32>, vector<1x128xf32> -> vector<1x128xf32>
    %c96 = arith.constant 96 : index
    %c0_37 = arith.constant 0 : index
    %88 = vector.load %arg1[%c96, %c0_37] : memref<104x128xf32, #tpu.memory_space<vmem>>, vector<1x128xf32>
    %89 = arith.addf %87, %88 : vector<1x128xf32>
    %90 = vector.broadcast %83 : vector<1x32xf32> to vector<8x32xf32>
    %91 = arith.mulf %64, %90 : vector<8x32xf32>
    %cst_38 = arith.constant dense<0.000000e+00> : vector<8x128xf32>
    %92 = tpu.matmul %91, %65, %cst_38 {dimension_numbers = #tpu.dot_dimension_numbers<[1], [0], [0], [1], [0, 0, 1, 1], [], []>} : vector<8x32xf32>, vector<32x128xf32>, vector<8x128xf32> -> vector<8x128xf32>
    %93 = vector.broadcast %89 : vector<1x128xf32> to vector<8x128xf32>
    %94 = arith.addf %92, %93 : vector<8x128xf32>
    %c0_39 = arith.constant 0 : index
    %c0_40 = arith.constant 0 : index
    %95 = vector.load %arg2[%c0_39, %c0_40] : memref<8x128xf32, #tpu.memory_space<vmem>>, vector<8x128xf32>
    tpu.vector_store %arg2[%c0_39, %c0_40], %94 {strides = array<i32>} : memref<8x128xf32, #tpu.memory_space<vmem>>, vector<8x128xf32>,
    return
  }
}

</mosaic_0001>

<llo_original>
// kernel: tpu_custom_call.1
$region0: #{tpu_custom_call.1}
  #allocation0 [shape = 'u32[]', space=smem, size = 0x4, offset = 0x4, fixed_abs, tag = 'smem constant byte address 0x4 - core index']
  #allocation1 [shape = 'u32[144,128]{1,0:T(1,128)}', space=vmem, size = 0x12000, scoped, tag = 'internal scratch']
  %s0 = inlined_call_operand.hbm [shape: f32[8,20], index: 0, kind: input, shape index: {}]
  %s1 = inlined_call_operand.hbm [shape: f32[104,128], index: 1, kind: input, shape index: {}]
  %s2 = inlined_call_operand.hbm [shape: f32[8,128], index: 2, kind: output, shape index: {}]
  %s3 = sld [smem:[#allocation0]]
  $region26: #{tpu_custom_call.1} parent=0
    _
  %s5 = ssub.s32 1, %s3
  %s6 = scalar_select 0, %s5, %s3
  $region1: #{tpu_custom_call.1} parent=0
    #allocation2 [shape = 'u8[4096]{0}', space=vmem, size = 0x1000, scoped, tag = 'input window, operand 0, single buffered']
    #allocation3 [shape = 's32[1]{0}', space=sflag, size = 0x4, scoped, tag = 'scoped memory for tpu_custom_call.1']
    #allocation4 [shape = 's32[1]{0}', space=sflag, size = 0x4, scoped, tag = 'scoped memory for tpu_custom_call.1']
    #allocation5 [shape = 'u8[53248]{0}', space=vmem, size = 0xd000, scoped, tag = 'input window, operand 1, single buffered']
    #allocation6 [shape = 's32[1]{0}', space=sflag, size = 0x4, scoped, tag = 'scoped memory for tpu_custom_call.1']
    #allocation7 [shape = 'u8[4096]{0}', space=vmem, size = 0x1000, scoped, tag = 'output window, operand 0, single buffered']
    %7 = vsyncpa [#allocation3], 0
    %8 = vsyncpa [#allocation6], 0
    %9 = vsyncpa [#allocation4], 0
    // Predicated region
    $region2: #{tpu_custom_call.1} parent=1 // pred_check
      _
    $region3: #{tpu_custom_call.1} parent=1 // pred_check_branch
      %11 = sbr.rel (0) target = $region5
    $region4: #{tpu_custom_call.1} parent=1 // pred_region
      %s13 = ssub.s32 128, 128
      %14 = vsyncadd [#allocation3], %s13
      %s16 = sshll.u32 [#allocation2], 4
      %s17 = int_to_ptr.vmem [resolvable:$true] %s16
      %19 = dma.hbm_to_vmem [thread:$0]  %s0, 128, %s17, [#allocation3]
    $region5: #{tpu_custom_call.1} parent=1 // pred_fallthru
      _
    // Predicated region
    $region6: #{tpu_custom_call.1} parent=1 // pred_check
      _
    $region7: #{tpu_custom_call.1} parent=1 // pred_check_branch
      %21 = sbr.rel (0) target = $region9
    $region8: #{tpu_custom_call.1} parent=1 // pred_region
      %s23 = ssub.s32 1664, 1664
      %24 = vsyncadd [#allocation6], %s23
      %s25 = sshll.u32 [#allocation5], 4
      %s26 = int_to_ptr.vmem [resolvable:$true] %s25
      %31 = dma.hbm_to_vmem [thread:$0]  %s1, 1664, %s26, [#allocation6], 128, 128, 8
    $region9: #{tpu_custom_call.1} parent=1 // pred_fallthru
      _
    // Predicated region
    $region10: #{tpu_custom_call.1} parent=1 // pred_check
      _
    $region11: #{tpu_custom_call.1} parent=1 // pred_check_branch
      %33 = sbr.rel (0) target = $region13
    $region12: #{tpu_custom_call.1} parent=1 // pred_region
      %34 = dma.done [#allocation3], 128
    $region13: #{tpu_custom_call.1} parent=1 // pred_fallthru
      _
    // Predicated region
    $region14: #{tpu_custom_call.1} parent=1 // pred_check
      _
    $region15: #{tpu_custom_call.1} parent=1 // pred_check_branch
      %36 = sbr.rel (0) target = $region17
    $region16: #{tpu_custom_call.1} parent=1 // pred_region
      %37 = dma.done [#allocation6], 1664
    $region17: #{tpu_custom_call.1} parent=1 // pred_fallthru
      _
    %v38 = vld [vmem:[#allocation2] sm:$0xff]
    %v39 = vld [vmem:[#allocation5] sm:$0xff]
    %v40 = vld [vmem:[#allocation5 + $0x8] sm:$0xff]
    %v41 = vld [vmem:[#allocation5 + $0x10] sm:$0xf]
    %vm42 = vcmask 162816
    %v43 = vsel %vm42, %v38, 0.0
    %v44 = vrot.slane %v43, 4
    %v45 = vadd.f32 %v43, %v44
    %v46 = vrot.slane %v45, 2
    %v47 = vadd.f32 %v45, %v46
    %v48 = vrot.slane %v47, 1
    %v49 = vadd.f32 %v47, %v48
    %v50 = vrcp.pop 8.0
    %v51 = vmul.f32 %v49, %v50
    %v52 = vmul.f32 %v38, %v38
    %v53 = vsel %vm42, %v52, 0.0
    %v54 = vrot.slane %v53, 4
    %v55 = vadd.f32 %v53, %v54
    %v56 = vrot.slane %v55, 2
    %v57 = vadd.f32 %v55, %v56
    %v58 = vrot.slane %v57, 1
    %v59 = vadd.f32 %v57, %v58
    %v60 = vmul.f32 %v59, %v50
    %v61 = vmul.f32 %v51, %v51
    %v62 = vsub.f32 %v60, %v61
    %v63 = vmax.f32 %v62, 0.0
    %v64 = vld [vmem:[#allocation5 + $0x58] sm:$0x1]
    %v65 = vadd.f32 %v63, 1e-05
    %v66 = vrsqrt.pop %v65
    %v67 = vmul.f32 %v64, %v66
    %v68 = vld [vmem:[#allocation5 + $0x59] sm:$0x1]
    %v69 = vmul.f32 %v51, %v67
    %v70 = vsub.f32 %v68, %v69
    %v71 = vld [vmem:[#allocation5 + $0x5e] sm:$0x1]
    %v73 = vsel %vm42, %v70, 0
    %vm75 = vcmask 1043456
    %v77 = vsel %vm75, %v41, 0
    %79 = vmatprep.subr.mxu0 0.0
    %80 = vmatpush1.msra.mxu0 %v39
    %81 = vmatprep.subr.mxu0 0.0
    %82 = vmatpush1.msra.mxu0 %v40
    %83 = vmatprep.subr.mxu0 0.0
    %84 = vmatpush1.msra.mxu0 %v77
    %85 = vmatprep.subr.mxu0 0.0
    %86 = vmatpush1.msra.mxu0 0.0
    %87 = vmatprep.subr.mxu0 0.0
    %88 = vmatpush1.msra.mxu0 0.0
    %89 = vmatprep.subr.mxu0 0.0
    %90 = vmatpush1.msra.mxu0 0.0
    %91 = vmatprep.subr.mxu0 0.0
    %92 = vmatpush1.msra.mxu0 0.0
    %93 = vmatprep.subr.mxu0 0.0
    %94 = vmatpush1.msra.mxu0 0.0
    %95 = vmatprep.subr.mxu0 0.0
    %96 = vmatpush1.msra.mxu0 0.0
    %97 = vmatprep.subr.mxu0 0.0
    %98 = vmatpush1.msra.mxu0 0.0
    %99 = vmatprep.subr.mxu0 0.0
    %100 = vmatpush1.msra.mxu0 0.0
    %101 = vmatprep.subr.mxu0 0.0
    %102 = vmatpush1.msra.mxu0 0.0
    %103 = vmatprep.subr.mxu0 0.0
    %104 = vmatpush1.msra.mxu0 0.0
    %105 = vmatprep.subr.mxu0 0.0
    %106 = vmatpush1.msra.mxu0 0.0
    %107 = vmatprep.subr.mxu0 0.0
    %108 = vmatpush1.msra.mxu0 0.0
    %109 = vmatprep.subr.mxu0 0.0
    %110 = vmatpush1.msra.mxu0 0.0
    %111 = vmatprep.subr.mxu0 0.0
    %112 = vmatpush1.msra.mxu0 0.0
    %113 = vmatprep.subr.mxu0 0.0
    %114 = vmatpush1.msra.mxu0 0.0
    %115 = vmatprep.subr.mxu0 0.0
    %116 = vmatpush1.msra.mxu0 0.0
    %117 = vmatprep.subr.mxu0 0.0
    %118 = vmatpush1.msra.mxu0 0.0
    %119 = vmatprep.subr.mxu0 0.0
    %120 = vmatpush1.msra.mxu0 0.0
    %121 = vmatprep.subr.mxu0 0.0
    %122 = vmatpush1.msra.mxu0 0.0
    %123 = vmatprep.subr.mxu0 0.0
    %124 = vmatpush1.msra.mxu0 0.0
    %125 = vmatprep.subr.mxu0 0.0
    %126 = vmatpush1.msra.mxu0 0.0
    %127 = vmatprep.subr.mxu0 0.0
    %128 = vmatpush1.msra.mxu0 0.0
    %129 = vmatprep.subr.mxu0 0.0
    %130 = vmatpush1.msra.mxu0 0.0
    %131 = vmatprep.subr.mxu0 0.0
    %132 = vmatpush1.msra.mxu0 0.0
    %133 = vmatprep.subr.mxu0 0.0
    %134 = vmatpush1.msra.mxu0 0.0
    %135 = vmatprep.subr.mxu0 0.0
    %136 = vmatpush1.msra.mxu0 0.0
    %137 = vmatprep.subr.mxu0 0.0
    %138 = vmatpush1.msra.mxu0 0.0
    %139 = vmatprep.subr.mxu0 0.0
    %140 = vmatpush1.msra.mxu0 0.0
    %141 = vmatprep.subr.mxu0 0.0
    %142 = vmatpush1.msra.mxu0 0.0
    %143 = vmatprep.mubr.f32.mxu0 0.0
    %144 = vmatmul.mubr.f32.gmra.mrb[0].mxu0 %v73
    %v145 = vpop.f32.mrb[0].mxu0
    %v146 = vadd.f32 %v71, %v145
    %v147 = vpop.f32.mrb[0].mxu0
    %148 = vdwg.mxu0
    %v149 = vlaneseq
    %v150 = vshrl.u32 %v149, 7
    %v151 = vsub.s32 0, %v150
    %v152 = vrot.slane %v67, %v151
    %v153 = vmul.f32 %v38, %v152
    %v154 = vlaneseq
    %v155 = vshrl.u32 %v154, 7
    %v156 = vsub.s32 0, %v155
    %v157 = vrot.slane %v146, %v156
    %v159 = vsel %vm42, %v153, 0
    %161 = vmatprep.subr.mxu0 0.0
    %162 = vmatpush1.msra.mxu0 %v39
    %163 = vmatprep.subr.mxu0 0.0
    %164 = vmatpush1.msra.mxu0 %v40
    %165 = vmatprep.subr.mxu0 0.0
    %166 = vmatpush1.msra.mxu0 %v77
    %167 = vmatprep.subr.mxu0 0.0
    %168 = vmatpush1.msra.mxu0 0.0
    %169 = vmatprep.subr.mxu0 0.0
    %170 = vmatpush1.msra.mxu0 0.0
    %171 = vmatprep.subr.mxu0 0.0
    %172 = vmatpush1.msra.mxu0 0.0
    %173 = vmatprep.subr.mxu0 0.0
    %174 = vmatpush1.msra.mxu0 0.0
    %175 = vmatprep.subr.mxu0 0.0
    %176 = vmatpush1.msra.mxu0 0.0
    %177 = vmatprep.subr.mxu0 0.0
    %178 = vmatpush1.msra.mxu0 0.0
    %179 = vmatprep.subr.mxu0 0.0
    %180 = vmatpush1.msra.mxu0 0.0
    %181 = vmatprep.subr.mxu0 0.0
    %182 = vmatpush1.msra.mxu0 0.0
    %183 = vmatprep.subr.mxu0 0.0
    %184 = vmatpush1.msra.mxu0 0.0
    %185 = vmatprep.subr.mxu0 0.0
    %186 = vmatpush1.msra.mxu0 0.0
    %187 = vmatprep.subr.mxu0 0.0
    %188 = vmatpush1.msra.mxu0 0.0
    %189 = vmatprep.subr.mxu0 0.0
    %190 = vmatpush1.msra.mxu0 0.0
    %191 = vmatprep.subr.mxu0 0.0
    %192 = vmatpush1.msra.mxu0 0.0
    %193 = vmatprep.subr.mxu0 0.0
    %194 = vmatpush1.msra.mxu0 0.0
    %195 = vmatprep.subr.mxu0 0.0
    %196 = vmatpush1.msra.mxu0 0.0
    %197 = vmatprep.subr.mxu0 0.0
    %198 = vmatpush1.msra.mxu0 0.0
    %199 = vmatprep.subr.mxu0 0.0
    %200 = vmatpush1.msra.mxu0 0.0
    %201 = vmatprep.subr.mxu0 0.0
    %202 = vmatpush1.msra.mxu0 0.0
    %203 = vmatprep.subr.mxu0 0.0
    %204 = vmatpush1.msra.mxu0 0.0
    %205 = vmatprep.subr.mxu0 0.0
    %206 = vmatpush1.msra.mxu0 0.0
    %207 = vmatprep.subr.mxu0 0.0
    %208 = vmatpush1.msra.mxu0 0.0
    %209 = vmatprep.subr.mxu0 0.0
    %210 = vmatpush1.msra.mxu0 0.0
    %211 = vmatprep.subr.mxu0 0.0
    %212 = vmatpush1.msra.mxu0 0.0
    %213 = vmatprep.subr.mxu0 0.0
    %214 = vmatpush1.msra.mxu0 0.0
    %215 = vmatprep.subr.mxu0 0.0
    %216 = vmatpush1.msra.mxu0 0.0
    %217 = vmatprep.subr.mxu0 0.0
    %218 = vmatpush1.msra.mxu0 0.0
    %219 = vmatprep.subr.mxu0 0.0
    %220 = vmatpush1.msra.mxu0 0.0
    %221 = vmatprep.subr.mxu0 0.0
    %222 = vmatpush1.msra.mxu0 0.0
    %223 = vmatprep.subr.mxu0 0.0
    %224 = vmatpush1.msra.mxu0 0.0
    %225 = vmatprep.mubr.f32.mxu0 0.0
    %226 = vmatmul.mubr.f32.gmra.mrb[0].mxu0 %v159
    %v227 = vpop.f32.mrb[0].mxu0
    %v228 = vadd.f32 %v157, %v227
    %v229 = vpop.f32.mrb[0].mxu0
    %230 = vdwg.mxu0
    %v231 = vmax.f32 %v228, 0.0
    %v232 = vld [vmem:[#allocation5 + $0x18] sm:$0xff]
    %v233 = vld [vmem:[#allocation5 + $0x20] sm:$0xff]
    %v234 = vld [vmem:[#allocation5 + $0x28] sm:$0xff]
    %v235 = vld [vmem:[#allocation5 + $0x30] sm:$0xff]
    %vm236 = vcmask 261120
    %v237 = vsel %vm236, %v231, 0.0
    %v238 = vrot.slane %v237, 4
    %v239 = vadd.f32 %v237, %v238
    %v240 = vrot.slane %v239, 2
    %v241 = vadd.f32 %v239, %v240
    %v242 = vrot.slane %v241, 1
    %v243 = vadd.f32 %v241, %v242
    %v244 = vmul.f32 %v243, %v50
    %v245 = vmul.f32 %v231, %v231
    %v246 = vsel %vm236, %v245, 0.0
    %v247 = vrot.slane %v246, 4
    %v248 = vadd.f32 %v246, %v247
    %v249 = vrot.slane %v248, 2
    %v250 = vadd.f32 %v248, %v249
    %v251 = vrot.slane %v250, 1
    %v252 = vadd.f32 %v250, %v251
    %v253 = vmul.f32 %v252, %v50
    %v254 = vmul.f32 %v244, %v244
    %v255 = vsub.f32 %v253, %v254
    %v256 = vmax.f32 %v255, 0.0
    %v257 = vld [vmem:[#allocation5 + $0x5a] sm:$0x1]
    %v258 = vadd.f32 %v256, 1e-05
    %v259 = vrsqrt.pop %v258
    %v260 = vmul.f32 %v257, %v259
    %v261 = vld [vmem:[#allocation5 + $0x5b] sm:$0x1]
    %v262 = vmul.f32 %v244, %v260
    %v263 = vsub.f32 %v261, %v262
    %v264 = vld [vmem:[#allocation5 + $0x5f] sm:$0x1]
    %v266 = vsel %vm236, %v263, 0
    %268 = vmatprep.subr.mxu0 0.0
    %269 = vmatpush1.msra.mxu0 %v232
    %270 = vmatprep.subr.mxu0 0.0
    %271 = vmatpush1.msra.mxu0 %v233
    %272 = vmatprep.subr.mxu0 0.0
    %273 = vmatpush1.msra.mxu0 %v234
    %274 = vmatprep.subr.mxu0 0.0
    %275 = vmatpush1.msra.mxu0 %v235
    %276 = vmatprep.subr.mxu0 0.0
    %277 = vmatpush1.msra.mxu0 0.0
    %278 = vmatprep.subr.mxu0 0.0
    %279 = vmatpush1.msra.mxu0 0.0
    %280 = vmatprep.subr.mxu0 0.0
    %281 = vmatpush1.msra.mxu0 0.0
    %282 = vmatprep.subr.mxu0 0.0
    %283 = vmatpush1.msra.mxu0 0.0
    %284 = vmatprep.subr.mxu0 0.0
    %285 = vmatpush1.msra.mxu0 0.0
    %286 = vmatprep.subr.mxu0 0.0
    %287 = vmatpush1.msra.mxu0 0.0
    %288 = vmatprep.subr.mxu0 0.0
    %289 = vmatpush1.msra.mxu0 0.0
    %290 = vmatprep.subr.mxu0 0.0
    %291 = vmatpush1.msra.mxu0 0.0
    %292 = vmatprep.subr.mxu0 0.0
    %293 = vmatpush1.msra.mxu0 0.0
    %294 = vmatprep.subr.mxu0 0.0
    %295 = vmatpush1.msra.mxu0 0.0
    %296 = vmatprep.subr.mxu0 0.0
    %297 = vmatpush1.msra.mxu0 0.0
    %298 = vmatprep.subr.mxu0 0.0
    %299 = vmatpush1.msra.mxu0 0.0
    %300 = vmatprep.subr.mxu0 0.0
    %301 = vmatpush1.msra.mxu0 0.0
    %302 = vmatprep.subr.mxu0 0.0
    %303 = vmatpush1.msra.mxu0 0.0
    %304 = vmatprep.subr.mxu0 0.0
    %305 = vmatpush1.msra.mxu0 0.0
    %306 = vmatprep.subr.mxu0 0.0
    %307 = vmatpush1.msra.mxu0 0.0
    %308 = vmatprep.subr.mxu0 0.0
    %309 = vmatpush1.msra.mxu0 0.0
    %310 = vmatprep.subr.mxu0 0.0
    %311 = vmatpush1.msra.mxu0 0.0
    %312 = vmatprep.subr.mxu0 0.0
    %313 = vmatpush1.msra.mxu0 0.0
    %314 = vmatprep.subr.mxu0 0.0
    %315 = vmatpush1.msra.mxu0 0.0
    %316 = vmatprep.subr.mxu0 0.0
    %317 = vmatpush1.msra.mxu0 0.0
    %318 = vmatprep.subr.mxu0 0.0
    %319 = vmatpush1.msra.mxu0 0.0
    %320 = vmatprep.subr.mxu0 0.0
    %321 = vmatpush1.msra.mxu0 0.0
    %322 = vmatprep.subr.mxu0 0.0
    %323 = vmatpush1.msra.mxu0 0.0
    %324 = vmatprep.subr.mxu0 0.0
    %325 = vmatpush1.msra.mxu0 0.0
    %326 = vmatprep.subr.mxu0 0.0
    %327 = vmatpush1.msra.mxu0 0.0
    %328 = vmatprep.subr.mxu0 0.0
    %329 = vmatpush1.msra.mxu0 0.0
    %330 = vmatprep.subr.mxu0 0.0
    %331 = vmatpush1.msra.mxu0 0.0
    %332 = vmatprep.mubr.f32.mxu0 0.0
    %333 = vmatmul.mubr.f32.gmra.mrb[0].mxu0 %v266
    %v334 = vpop.f32.mrb[0].mxu0
    %v335 = vadd.f32 %v264, %v334
    %v336 = vpop.f32.mrb[0].mxu0
    %337 = vdwg.mxu0
    %v338 = vlaneseq
    %v339 = vshrl.u32 %v338, 7
    %v340 = vsub.s32 0, %v339
    %v341 = vrot.slane %v260, %v340
    %v342 = vmul.f32 %v231, %v341
    %v343 = vlaneseq
    %v344 = vshrl.u32 %v343, 7
    %v345 = vsub.s32 0, %v344
    %v346 = vrot.slane %v335, %v345
    %v348 = vsel %vm236, %v342, 0
    %350 = vmatprep.subr.mxu0 0.0
    %351 = vmatpush1.msra.mxu0 %v232
    %352 = vmatprep.subr.mxu0 0.0
    %353 = vmatpush1.msra.mxu0 %v233
    %354 = vmatprep.subr.mxu0 0.0
    %355 = vmatpush1.msra.mxu0 %v234
    %356 = vmatprep.subr.mxu0 0.0
    %357 = vmatpush1.msra.mxu0 %v235
    %358 = vmatprep.subr.mxu0 0.0
    %359 = vmatpush1.msra.mxu0 0.0
    %360 = vmatprep.subr.mxu0 0.0
    %361 = vmatpush1.msra.mxu0 0.0
    %362 = vmatprep.subr.mxu0 0.0
    %363 = vmatpush1.msra.mxu0 0.0
    %364 = vmatprep.subr.mxu0 0.0
    %365 = vmatpush1.msra.mxu0 0.0
    %366 = vmatprep.subr.mxu0 0.0
    %367 = vmatpush1.msra.mxu0 0.0
    %368 = vmatprep.subr.mxu0 0.0
    %369 = vmatpush1.msra.mxu0 0.0
    %370 = vmatprep.subr.mxu0 0.0
    %371 = vmatpush1.msra.mxu0 0.0
    %372 = vmatprep.subr.mxu0 0.0
    %373 = vmatpush1.msra.mxu0 0.0
    %374 = vmatprep.subr.mxu0 0.0
    %375 = vmatpush1.msra.mxu0 0.0
    %376 = vmatprep.subr.mxu0 0.0
    %377 = vmatpush1.msra.mxu0 0.0
    %378 = vmatprep.subr.mxu0 0.0
    %379 = vmatpush1.msra.mxu0 0.0
    %380 = vmatprep.subr.mxu0 0.0
    %381 = vmatpush1.msra.mxu0 0.0
    %382 = vmatprep.subr.mxu0 0.0
    %383 = vmatpush1.msra.mxu0 0.0
    %384 = vmatprep.subr.mxu0 0.0
    %385 = vmatpush1.msra.mxu0 0.0
    %386 = vmatprep.subr.mxu0 0.0
    %387 = vmatpush1.msra.mxu0 0.0
    %388 = vmatprep.subr.mxu0 0.0
    %389 = vmatpush1.msra.mxu0 0.0
    %390 = vmatprep.subr.mxu0 0.0
    %391 = vmatpush1.msra.mxu0 0.0
    %392 = vmatprep.subr.mxu0 0.0
    %393 = vmatpush1.msra.mxu0 0.0
    %394 = vmatprep.subr.mxu0 0.0
    %395 = vmatpush1.msra.mxu0 0.0
    %396 = vmatprep.subr.mxu0 0.0
    %397 = vmatpush1.msra.mxu0 0.0
    %398 = vmatprep.subr.mxu0 0.0
    %399 = vmatpush1.msra.mxu0 0.0
    %400 = vmatprep.subr.mxu0 0.0
    %401 = vmatpush1.msra.mxu0 0.0
    %402 = vmatprep.subr.mxu0 0.0
    %403 = vmatpush1.msra.mxu0 0.0
    %404 = vmatprep.subr.mxu0 0.0
    %405 = vmatpush1.msra.mxu0 0.0
    %406 = vmatprep.subr.mxu0 0.0
    %407 = vmatpush1.msra.mxu0 0.0
    %408 = vmatprep.subr.mxu0 0.0
    %409 = vmatpush1.msra.mxu0 0.0
    %410 = vmatprep.subr.mxu0 0.0
    %411 = vmatpush1.msra.mxu0 0.0
    %412 = vmatprep.subr.mxu0 0.0
    %413 = vmatpush1.msra.mxu0 0.0
    %414 = vmatprep.mubr.f32.mxu0 0.0
    %415 = vmatmul.mubr.f32.gmra.mrb[0].mxu0 %v348
    %v416 = vpop.f32.mrb[0].mxu0
    %v417 = vadd.f32 %v346, %v416
    %v418 = vpop.f32.mrb[0].mxu0
    %419 = vdwg.mxu0
    %v420 = vmax.f32 %v417, 0.0
    %v421 = vld [vmem:[#allocation5 + $0x38] sm:$0xff]
    %v422 = vld [vmem:[#allocation5 + $0x40] sm:$0xff]
    %v423 = vld [vmem:[#allocation5 + $0x48] sm:$0xff]
    %v424 = vld [vmem:[#allocation5 + $0x50] sm:$0xff]
    %v425 = vsel %vm236, %v420, 0.0
    %v426 = vrot.slane %v425, 4
    %v427 = vadd.f32 %v425, %v426
    %v428 = vrot.slane %v427, 2
    %v429 = vadd.f32 %v427, %v428
    %v430 = vrot.slane %v429, 1
    %v431 = vadd.f32 %v429, %v430
    %v432 = vmul.f32 %v431, %v50
    %v433 = vmul.f32 %v420, %v420
    %v434 = vsel %vm236, %v433, 0.0
    %v435 = vrot.slane %v434, 4
    %v436 = vadd.f32 %v434, %v435
    %v437 = vrot.slane %v436, 2
    %v438 = vadd.f32 %v436, %v437
    %v439 = vrot.slane %v438, 1
    %v440 = vadd.f32 %v438, %v439
    %v441 = vmul.f32 %v440, %v50
    %v442 = vmul.f32 %v432, %v432
    %v443 = vsub.f32 %v441, %v442
    %v444 = vmax.f32 %v443, 0.0
    %v445 = vld [vmem:[#allocation5 + $0x5c] sm:$0x1]
    %v446 = vadd.f32 %v444, 1e-05
    %v447 = vrsqrt.pop %v446
    %v448 = vmul.f32 %v445, %v447
    %v449 = vld [vmem:[#allocation5 + $0x5d] sm:$0x1]
    %v450 = vmul.f32 %v432, %v448
    %v451 = vsub.f32 %v449, %v450
    %v452 = vld [vmem:[#allocation5 + $0x60] sm:$0x1]
    %v454 = vsel %vm236, %v451, 0
    %456 = vmatprep.subr.mxu0 0.0
    %457 = vmatpush1.msra.mxu0 %v421
    %458 = vmatprep.subr.mxu0 0.0
    %459 = vmatpush1.msra.mxu0 %v422
    %460 = vmatprep.subr.mxu0 0.0
    %461 = vmatpush1.msra.mxu0 %v423
    %462 = vmatprep.subr.mxu0 0.0
    %463 = vmatpush1.msra.mxu0 %v424
    %464 = vmatprep.subr.mxu0 0.0
    %465 = vmatpush1.msra.mxu0 0.0
    %466 = vmatprep.subr.mxu0 0.0
    %467 = vmatpush1.msra.mxu0 0.0
    %468 = vmatprep.subr.mxu0 0.0
    %469 = vmatpush1.msra.mxu0 0.0
    %470 = vmatprep.subr.mxu0 0.0
    %471 = vmatpush1.msra.mxu0 0.0
    %472 = vmatprep.subr.mxu0 0.0
    %473 = vmatpush1.msra.mxu0 0.0
    %474 = vmatprep.subr.mxu0 0.0
    %475 = vmatpush1.msra.mxu0 0.0
    %476 = vmatprep.subr.mxu0 0.0
    %477 = vmatpush1.msra.mxu0 0.0
    %478 = vmatprep.subr.mxu0 0.0
    %479 = vmatpush1.msra.mxu0 0.0
    %480 = vmatprep.subr.mxu0 0.0
    %481 = vmatpush1.msra.mxu0 0.0
    %482 = vmatprep.subr.mxu0 0.0
    %483 = vmatpush1.msra.mxu0 0.0
    %484 = vmatprep.subr.mxu0 0.0
    %485 = vmatpush1.msra.mxu0 0.0
    %486 = vmatprep.subr.mxu0 0.0
    %487 = vmatpush1.msra.mxu0 0.0
    %488 = vmatprep.subr.mxu0 0.0
    %489 = vmatpush1.msra.mxu0 0.0
    %490 = vmatprep.subr.mxu0 0.0
    %491 = vmatpush1.msra.mxu0 0.0
    %492 = vmatprep.subr.mxu0 0.0
    %493 = vmatpush1.msra.mxu0 0.0
    %494 = vmatprep.subr.mxu0 0.0
    %495 = vmatpush1.msra.mxu0 0.0
    %496 = vmatprep.subr.mxu0 0.0
    %497 = vmatpush1.msra.mxu0 0.0
    %498 = vmatprep.subr.mxu0 0.0
    %499 = vmatpush1.msra.mxu0 0.0
    %500 = vmatprep.subr.mxu0 0.0
    %501 = vmatpush1.msra.mxu0 0.0
    %502 = vmatprep.subr.mxu0 0.0
    %503 = vmatpush1.msra.mxu0 0.0
    %504 = vmatprep.subr.mxu0 0.0
    %505 = vmatpush1.msra.mxu0 0.0
    %506 = vmatprep.subr.mxu0 0.0
    %507 = vmatpush1.msra.mxu0 0.0
    %508 = vmatprep.subr.mxu0 0.0
    %509 = vmatpush1.msra.mxu0 0.0
    %510 = vmatprep.subr.mxu0 0.0
    %511 = vmatpush1.msra.mxu0 0.0
    %512 = vmatprep.subr.mxu0 0.0
    %513 = vmatpush1.msra.mxu0 0.0
    %514 = vmatprep.subr.mxu0 0.0
    %515 = vmatpush1.msra.mxu0 0.0
    %516 = vmatprep.subr.mxu0 0.0
    %517 = vmatpush1.msra.mxu0 0.0
    %518 = vmatprep.subr.mxu0 0.0
    %519 = vmatpush1.msra.mxu0 0.0
    %520 = vmatprep.mubr.f32.mxu0 0.0
    %521 = vmatmul.mubr.f32.gmra.mrb[0].mxu0 %v454
    %v522 = vpop.f32.mrb[0].mxu0
    %v523 = vadd.f32 %v452, %v522
    %v524 = vpop.f32.mrb[0].mxu0
    %525 = vdwg.mxu0
    %v526 = vlaneseq
    %v527 = vshrl.u32 %v526, 7
    %v528 = vsub.s32 0, %v527
    %v529 = vrot.slane %v448, %v528
    %v530 = vmul.f32 %v420, %v529
    %v531 = vlaneseq
    %v532 = vshrl.u32 %v531, 7
    %v533 = vsub.s32 0, %v532
    %v534 = vrot.slane %v523, %v533
    %v536 = vsel %vm236, %v530, 0
    %538 = vmatprep.subr.mxu0 0.0
    %539 = vmatpush1.msra.mxu0 %v421
    %540 = vmatprep.subr.mxu0 0.0
    %541 = vmatpush1.msra.mxu0 %v422
    %542 = vmatprep.subr.mxu0 0.0
    %543 = vmatpush1.msra.mxu0 %v423
    %544 = vmatprep.subr.mxu0 0.0
    %545 = vmatpush1.msra.mxu0 %v424
    %546 = vmatprep.subr.mxu0 0.0
    %547 = vmatpush1.msra.mxu0 0.0
    %548 = vmatprep.subr.mxu0 0.0
    %549 = vmatpush1.msra.mxu0 0.0
    %550 = vmatprep.subr.mxu0 0.0
    %551 = vmatpush1.msra.mxu0 0.0
    %552 = vmatprep.subr.mxu0 0.0
    %553 = vmatpush1.msra.mxu0 0.0
    %554 = vmatprep.subr.mxu0 0.0
    %555 = vmatpush1.msra.mxu0 0.0
    %556 = vmatprep.subr.mxu0 0.0
    %557 = vmatpush1.msra.mxu0 0.0
    %558 = vmatprep.subr.mxu0 0.0
    %559 = vmatpush1.msra.mxu0 0.0
    %560 = vmatprep.subr.mxu0 0.0
    %561 = vmatpush1.msra.mxu0 0.0
    %562 = vmatprep.subr.mxu0 0.0
    %563 = vmatpush1.msra.mxu0 0.0
    %564 = vmatprep.subr.mxu0 0.0
    %565 = vmatpush1.msra.mxu0 0.0
    %566 = vmatprep.subr.mxu0 0.0
    %567 = vmatpush1.msra.mxu0 0.0
    %568 = vmatprep.subr.mxu0 0.0
    %569 = vmatpush1.msra.mxu0 0.0
    %570 = vmatprep.subr.mxu0 0.0
    %571 = vmatpush1.msra.mxu0 0.0
    %572 = vmatprep.subr.mxu0 0.0
    %573 = vmatpush1.msra.mxu0 0.0
    %574 = vmatprep.subr.mxu0 0.0
    %575 = vmatpush1.msra.mxu0 0.0
    %576 = vmatprep.subr.mxu0 0.0
    %577 = vmatpush1.msra.mxu0 0.0
    %578 = vmatprep.subr.mxu0 0.0
    %579 = vmatpush1.msra.mxu0 0.0
    %580 = vmatprep.subr.mxu0 0.0
    %581 = vmatpush1.msra.mxu0 0.0
    %582 = vmatprep.subr.mxu0 0.0
    %583 = vmatpush1.msra.mxu0 0.0
    %584 = vmatprep.subr.mxu0 0.0
    %585 = vmatpush1.msra.mxu0 0.0
    %586 = vmatprep.subr.mxu0 0.0
    %587 = vmatpush1.msra.mxu0 0.0
    %588 = vmatprep.subr.mxu0 0.0
    %589 = vmatpush1.msra.mxu0 0.0
    %590 = vmatprep.subr.mxu0 0.0
    %591 = vmatpush1.msra.mxu0 0.0
    %592 = vmatprep.subr.mxu0 0.0
    %593 = vmatpush1.msra.mxu0 0.0
    %594 = vmatprep.subr.mxu0 0.0
    %595 = vmatpush1.msra.mxu0 0.0
    %596 = vmatprep.subr.mxu0 0.0
    %597 = vmatpush1.msra.mxu0 0.0
    %598 = vmatprep.subr.mxu0 0.0
    %599 = vmatpush1.msra.mxu0 0.0
    %600 = vmatprep.subr.mxu0 0.0
    %601 = vmatpush1.msra.mxu0 0.0
    %602 = vmatprep.mubr.f32.mxu0 0.0
    %603 = vmatmul.mubr.f32.gmra.mrb[0].mxu0 %v536
    %v604 = vpop.f32.mrb[0].mxu0
    %v605 = vadd.f32 %v534, %v604
    %v606 = vpop.f32.mrb[0].mxu0
    %607 = vdwg.mxu0
    %608 = vst [vmem:[#allocation7] sm:$0xff] %v605
    // Predicated region
    $region18: #{tpu_custom_call.1} parent=1 // pred_check
      _
    $region19: #{tpu_custom_call.1} parent=1 // pred_check_branch
      %610 = sbr.rel (0) target = $region21
    $region20: #{tpu_custom_call.1} parent=1 // pred_region
      %s612 = ssub.s32 128, 128
      %613 = vsyncadd [#allocation4], %s612
      %s615 = sshll.u32 [#allocation7], 4
      %s616 = int_to_ptr.vmem [resolvable:$true] %s615
      %618 = dma.vmem_to_hbm [thread:$0]  %s616, 128, %s2, [#allocation4]
    $region21: #{tpu_custom_call.1} parent=1 // pred_fallthru
      _
    // Predicated region
    $region22: #{tpu_custom_call.1} parent=1 // pred_check
      _
    $region23: #{tpu_custom_call.1} parent=1 // pred_check_branch
      %620 = sbr.rel (0) target = $region25
    $region24: #{tpu_custom_call.1} parent=1 // pred_region
      %621 = dma.done [#allocation4], 128
    $region25: #{tpu_custom_call.1} parent=1 // pred_fallthru
      _
    %622 = vsyncpa [#allocation3], 1
    %623 = vsyncpa [#allocation6], 1
    %624 = vsyncpa [#allocation4], 1

</llo_original>
